<compile_context>
chip_gen: v7x
topology: tpu7x:2x2x1
jax: 0.10.0
libtpu: 0.0.40
codegen_flags: <defaults>
</compile_context>

<pallas_src>
import functools

import numpy as np
import jax
import jax.numpy as jnp
from jax import lax
from jax.experimental import pallas as pl
from jax.experimental.pallas import tpu as pltpu

LANE = 128
MAX_TILE_ROWS = 4096   # (4096,128) f32 tile = 2 MiB; 2 inputs x 2 bufs = 8 MiB VMEM
CHUNK_ROWS = 256       # in-kernel accumulation chunk (bounds VMEM temporaries)

# torch's clamp(1e-5, 0.99999) reproduced through the log-sigmoid identities
#   log(pt)     = -log(1 + e^-x)
#   log(1 - pt) = -x - log(1 + e^-x)
# by clipping to the exact f32 values torch's log(clamp(pt)) / log(1 - clamp(pt))
# would produce.
_F32 = np.float32
_LOG_PT_LO = float(np.log(_F32(1e-5)))
_LOG_PT_HI = float(np.log(_F32(0.99999)))
_LOG_1MPT_LO = float(np.log(_F32(1.0) - _F32(0.99999)))
_LOG_1MPT_HI = float(np.log(_F32(1.0) - _F32(1e-5)))


def _focal_loss_kernel(x_ref, t_ref, out_ref, *, gamma, alpha, numel,
                       tile_rows, chunk_rows, needs_mask):
    i = pl.program_id(0)
    n_chunks = tile_rows // chunk_rows

    def elementwise_loss(x, t):
        # x, t: (chunk_rows, LANE) f32.
        # |x| > 30 is already deep inside torch's clamp(1e-5, 0.99999) region
        # (clamp threshold is |x| ~= 11.51); clamping x keeps exp/recip finite
        # so the Newton step never sees inf*0 -> NaN.
        xc = jnp.clip(x, -30.0, 30.0)
        e = jnp.exp(-xc)                        # EUP 1
        denom = 1.0 + e
        r = pl.reciprocal(denom, approx=True)   # EUP 2
        r = r * (2.0 - denom * r)               # 1 Newton step on the VPU (free slot)
        pt = jnp.clip(r, 1e-5, 0.99999)
        log_denom = jnp.log(denom)              # EUP 3: one log feeds both log terms
        log_pt = jnp.clip(-log_denom, _LOG_PT_LO, _LOG_PT_HI)
        log_1m_pt = jnp.clip(-xc - log_denom, _LOG_1MPT_LO, _LOG_1MPT_HI)
        one_m_pt = 1.0 - pt
        # Specialize common integer gammas (float pow = exp(g*log(x)) = 2 EUP ops).
        if gamma == 2.0:
            w_pos = one_m_pt * one_m_pt
            w_neg = pt * pt
        elif gamma == 1.0:
            w_pos = one_m_pt
            w_neg = pt
        elif gamma == 0.0:
            w_pos = jnp.ones_like(pt)
            w_neg = jnp.ones_like(pt)
        else:
            w_pos = one_m_pt ** gamma
            w_neg = pt ** gamma
        return ((-alpha) * w_pos * t * log_pt
                - (1.0 - alpha) * w_neg * (1.0 - t) * log_1m_pt)

    def chunk_partial(c, masked):
        r0 = c * chunk_rows
        if not isinstance(c, int):
            # Multi-chunk path: chunk_rows == CHUNK_ROWS (power of two) -> aligned loads.
            r0 = pl.multiple_of(r0, chunk_rows)
        x = x_ref[pl.ds(r0, chunk_rows), :].astype(jnp.float32)
        t = t_ref[pl.ds(r0, chunk_rows), :].astype(jnp.float32)
        loss = elementwise_loss(x, t)
        if masked:
            # Tail block only. Select (not multiply) so garbage/NaN in the ragged
            # final-block VMEM region and the lane zero-pad cannot leak into the sum.
            row = lax.broadcasted_iota(jnp.int32, (chunk_rows, LANE), 0)
            col = lax.broadcasted_iota(jnp.int32, (chunk_rows, LANE), 1)
            gidx = (i * tile_rows + r0 + row) * LANE + col
            loss = jnp.where(gidx < numel, loss, 0.0)
        # (chunk_rows,128) -> (8,128): plain VPU folds of whole vregs.
        return loss.reshape(-1, 8, LANE).sum(axis=0)

    def block_sum(masked):
        if n_chunks == 1:
            return chunk_partial(0, masked)
        return lax.fori_loop(
            0, n_chunks,
            lambda c, acc: acc + chunk_partial(c, masked),
            jnp.zeros((8, LANE), jnp.float32),
            unroll=True)

    if needs_mask:
        is_tail = i == pl.num_programs(0) - 1

        @pl.when(is_tail)
        def _():
            out_ref[...] = block_sum(True).reshape(1, 8, LANE)

        @pl.when(jnp.logical_not(is_tail))
        def _():
            out_ref[...] = block_sum(False).reshape(1, 8, LANE)
    else:
        out_ref[...] = block_sum(False).reshape(1, 8, LANE)


def _sublane_granule(dtype) -> int:
    # 8 for 4-byte dtypes, 16 for bf16/f16, 32 for int8/fp8 (packed min tile).
    itemsize = jnp.dtype(dtype).itemsize
    return 8 * max(1, 4 // itemsize)


def focal_loss(_input, target, gamma=2.0, alpha=0.5, reduction="mean"):
    """Pallas TPU focal loss matching PyTorch FocalLoss.forward semantics."""
    assert _input.shape == target.shape
    numel = _input.size

    if reduction not in ("mean", "sum"):
        # TODO(synk): reduction='none' (elementwise output) not implemented here.
        raise NotImplementedError(f"reduction={reduction!r}")

    # Flatten at native dtype: contiguous reshape is free (no HBM pass).
    x_flat = _input.reshape(-1)
    t_flat = target.reshape(-1)

    rows = -(-numel // LANE)
    lane_pad = rows * LANE - numel
    if lane_pad:
        # Only sizes with numel % 128 != 0 pay this (<128 pad elements, but the
        # pad op rewrites the whole array once).
        # TODO(synk): avoid entirely with a bulk + <128-element remainder split.
        x_flat = jnp.pad(x_flat, (0, lane_pad))
        t_flat = jnp.pad(t_flat, (0, lane_pad))

    x2 = x_flat.reshape(rows, LANE)
    t2 = t_flat.reshape(rows, LANE)

    # Tile selection:
    #  * >= 2 grid blocks whenever rows permit, so both v7x TensorCores get work.
    #  * block second-to-last dim respects native-dtype sublane packing.
    #  * large blocks (multiples of CHUNK_ROWS, up to MAX_TILE_ROWS) keep the
    #    mem-bound stream near HBM roofline; the in-kernel chunk loop bounds
    #    temporaries so the 2 MiB tiles still fit default scoped VMEM everywhere.
    sub = max(_sublane_granule(x2.dtype), _sublane_granule(t2.dtype))
    half = -(-rows // 2)
    if half >= CHUNK_ROWS:
        tile_rows = min(MAX_TILE_ROWS, (half // CHUNK_ROWS) * CHUNK_ROWS)
        chunk_rows = CHUNK_ROWS
    else:
        tile_rows = max(sub, -(-half // sub) * sub)
        chunk_rows = tile_rows
    num_blocks = -(-rows // tile_rows)
    # Any invalid data (lane zero-pad and/or ragged final block) lives only in
    # the last block; mask there and only there.
    needs_mask = (numel != num_blocks * tile_rows * LANE)

    kernel = functools.partial(
        _focal_loss_kernel,
        gamma=float(gamma), alpha=float(alpha), numel=int(numel),
        tile_rows=int(tile_rows), chunk_rows=int(chunk_rows),
        needs_mask=bool(needs_mask))

    tile_spec = pl.BlockSpec((tile_rows, LANE), lambda b: (b, 0))

    partials = pl.pallas_call(
        kernel,
        out_shape=jax.ShapeDtypeStruct((num_blocks, 8, LANE), jnp.float32),
        grid_spec=pltpu.PrefetchScalarGridSpec(
            num_scalar_prefetch=0,
            grid=(num_blocks,),
            in_specs=[tile_spec, tile_spec],
            out_specs=pl.BlockSpec((1, 8, LANE), lambda b: (b, 0, 0)),
        ),
        compiler_params=pltpu.CompilerParams(
            dimension_semantics=("parallel",)),
    )(x2, t2)

    total = jnp.sum(partials)  # tiny (num_blocks*8*128) reduce in XLA
    if reduction == "mean":
        return total / numel
    return total


def focal_loss_ref(_input, target, gamma=2.0, alpha=0.5, reduction="mean"):
    pt = jax.nn.sigmoid(_input.astype(jnp.float32))
    pt = jnp.clip(pt, 1e-5, 0.99999)
    t = target.astype(jnp.float32)
    loss = (-alpha * (1 - pt) ** gamma * t * jnp.log(pt)
            - (1 - alpha) * pt ** gamma * (1 - t) * jnp.log(1 - pt))
    if reduction == "mean":
        return jnp.mean(loss)
    return jnp.sum(loss)


if __name__ == "__main__":
    key = jax.random.PRNGKey(0)
    k1, k2, k3, k4, k5, k6, k7, k8 = jax.random.split(key, 8)

    # Case 1: module-shaped NCHW logits + binary targets, 'mean' reduction.
    #   numel=2048 -> no pad, 2 grid blocks, unmasked path.
    x1 = jax.random.normal(k1, (2, 4, 16, 16), dtype=jnp.float32)
    t1 = (jax.random.uniform(k2, (2, 4, 16, 16)) > 0.5).astype(jnp.float32)
    out1 = jax.block_until_ready(focal_loss(x1, t1, gamma=2.0, alpha=0.5))
    ref1 = focal_loss_ref(x1, t1, gamma=2.0, alpha=0.5)
    assert jnp.allclose(out1, ref1, rtol=5e-5, atol=1e-6), (out1, ref1)

    # Case 2: ragged size (numel % 128 != 0) + 'sum' -> small lane pad + tail mask.
    x2 = jax.random.normal(k3, (2, 3, 17, 19), dtype=jnp.float32)
    t2 = (jax.random.uniform(k4, (2, 3, 17, 19)) > 0.5).astype(jnp.float32)
    out2 = jax.block_until_ready(
        focal_loss(x2, t2, gamma=2.0, alpha=0.5, reduction="sum"))
    ref2 = focal_loss_ref(x2, t2, gamma=2.0, alpha=0.5, reduction="sum")
    assert jnp.allclose(out2, ref2, rtol=5e-5, atol=1e-5), (out2, ref2)

    # Case 3: numel % 128 == 0 but rows % tile_rows != 0 -> NO wrapper pad at all;
    #   ragged final grid block, in-kernel garbage masking. Different gamma/alpha.
    x3 = jax.random.normal(k5, (1, 1, 24, 128), dtype=jnp.float32)
    t3 = (jax.random.uniform(k6, (1, 1, 24, 128)) > 0.5).astype(jnp.float32)
    out3 = jax.block_until_ready(focal_loss(x3, t3, gamma=1.0, alpha=0.25))
    ref3 = focal_loss_ref(x3, t3, gamma=1.0, alpha=0.25)
    assert jnp.allclose(out3, ref3, rtol=5e-5, atol=1e-6), (out3, ref3)

    # Case 4: big enough to exercise the multi-chunk in-kernel accumulation loop
    #   (tile_rows=512, chunk_rows=256) plus a ragged final block, no wrapper pad.
    x4 = jax.random.normal(k7, (2, 4, 129, 128), dtype=jnp.float32)
    t4 = (jax.random.uniform(k8, (2, 4, 129, 128)) > 0.5).astype(jnp.float32)
    out4 = jax.block_until_ready(
        focal_loss(x4, t4, gamma=2.0, alpha=0.5, reduction="sum"))
    ref4 = focal_loss_ref(x4, t4, gamma=2.0, alpha=0.5, reduction="sum")
    assert jnp.allclose(out4, ref4, rtol=1e-4, atol=1e-3), (out4, ref4)

    print("KERNEL_OK")
</pallas_src>

<mosaic_0001>
module attributes {stable_mosaic.version = 11 : i64} {
  func.func @_focal_loss_kernel(%arg0: i32, %arg1: memref<8x128xf32, #tpu.memory_space<vmem>>, %arg2: memref<8x128xf32, #tpu.memory_space<vmem>>, %arg3: memref<1x8x128xf32, #tpu.memory_space<vmem>>) attributes {dimension_semantics = [#tpu.dimension_semantics<parallel>], iteration_bounds = array<i64: 2>, scalar_prefetch = 0 : i64, scratch_operands = 0 : i64, tpu.core_type = #tpu.core_type<tc>, window_params = [{transform_indices = @transform_0, window_bounds = array<i64: 8, 128>}, {transform_indices = @transform_1, window_bounds = array<i64: 8, 128>}, {transform_indices = @transform_2, window_bounds = array<i64: 1, 8, 128>}]} {
    %c0 = arith.constant 0 : index
    %c0_0 = arith.constant 0 : index
    %0 = vector.load %arg1[%c0, %c0_0] : memref<8x128xf32, #tpu.memory_space<vmem>>, vector<8x128xf32>
    %c0_1 = arith.constant 0 : index
    %c0_2 = arith.constant 0 : index
    %1 = vector.load %arg2[%c0_1, %c0_2] : memref<8x128xf32, #tpu.memory_space<vmem>>, vector<8x128xf32>
    %cst = arith.constant -3.000000e+01 : f32
    %cst_3 = arith.constant 3.000000e+01 : f32
    %2 = vector.broadcast %cst : f32 to vector<8x128xf32>
    %3 = arith.maximumf %2, %0 : vector<8x128xf32>
    %4 = vector.broadcast %cst_3 : f32 to vector<8x128xf32>
    %5 = arith.minimumf %4, %3 : vector<8x128xf32>
    %cst_4 = arith.constant 0.000000e+00 : f32
    %6 = vector.broadcast %cst_4 : f32 to vector<8x128xf32>
    %7 = arith.subf %6, %5 : vector<8x128xf32>
    %8 = math.exp %7 : vector<8x128xf32>
    %cst_5 = arith.constant 1.000000e+00 : f32
    %9 = vector.broadcast %cst_5 : f32 to vector<8x128xf32>
    %10 = arith.addf %9, %8 : vector<8x128xf32>
    %11 = tpu.reciprocal %10 {approx = true} : vector<8x128xf32> -> vector<8x128xf32>
    %12 = arith.mulf %10, %11 : vector<8x128xf32>
    %cst_6 = arith.constant 2.000000e+00 : f32
    %13 = vector.broadcast %cst_6 : f32 to vector<8x128xf32>
    %14 = arith.subf %13, %12 : vector<8x128xf32>
    %15 = arith.mulf %11, %14 : vector<8x128xf32>
    %cst_7 = arith.constant 9.99999974E-6 : f32
    %cst_8 = arith.constant 0.999989986 : f32
    %16 = vector.broadcast %cst_7 : f32 to vector<8x128xf32>
    %17 = arith.maximumf %16, %15 : vector<8x128xf32>
    %18 = vector.broadcast %cst_8 : f32 to vector<8x128xf32>
    %19 = arith.minimumf %18, %17 : vector<8x128xf32>
    %20 = math.log %10 : vector<8x128xf32>
    %cst_9 = arith.constant 0.000000e+00 : f32
    %21 = vector.broadcast %cst_9 : f32 to vector<8x128xf32>
    %22 = arith.subf %21, %20 : vector<8x128xf32>
    %cst_10 = arith.constant -11.5129251 : f32
    %cst_11 = arith.constant -1.00136303E-5 : f32
    %23 = vector.broadcast %cst_10 : f32 to vector<8x128xf32>
    %24 = arith.maximumf %23, %22 : vector<8x128xf32>
    %25 = vector.broadcast %cst_11 : f32 to vector<8x128xf32>
    %26 = arith.minimumf %25, %24 : vector<8x128xf32>
    %cst_12 = arith.constant 0.000000e+00 : f32
    %27 = vector.broadcast %cst_12 : f32 to vector<8x128xf32>
    %28 = arith.subf %27, %5 : vector<8x128xf32>
    %29 = arith.subf %28, %20 : vector<8x128xf32>
    %cst_13 = arith.constant -11.5115681 : f32
    %cst_14 = arith.constant -1.00136303E-5 : f32
    %30 = vector.broadcast %cst_13 : f32 to vector<8x128xf32>
    %31 = arith.maximumf %30, %29 : vector<8x128xf32>
    %32 = vector.broadcast %cst_14 : f32 to vector<8x128xf32>
    %33 = arith.minimumf %32, %31 : vector<8x128xf32>
    %cst_15 = arith.constant 1.000000e+00 : f32
    %34 = vector.broadcast %cst_15 : f32 to vector<8x128xf32>
    %35 = arith.subf %34, %19 : vector<8x128xf32>
    %36 = arith.mulf %35, %35 : vector<8x128xf32>
    %37 = arith.mulf %19, %19 : vector<8x128xf32>
    %cst_16 = arith.constant -5.000000e-01 : f32
    %38 = vector.broadcast %cst_16 : f32 to vector<8x128xf32>
    %39 = arith.mulf %38, %36 : vector<8x128xf32>
    %40 = arith.mulf %39, %1 : vector<8x128xf32>
    %41 = arith.mulf %40, %26 : vector<8x128xf32>
    %cst_17 = arith.constant 5.000000e-01 : f32
    %42 = vector.broadcast %cst_17 : f32 to vector<8x128xf32>
    %43 = arith.mulf %42, %37 : vector<8x128xf32>
    %cst_18 = arith.constant 1.000000e+00 : f32
    %44 = vector.broadcast %cst_18 : f32 to vector<8x128xf32>
    %45 = arith.subf %44, %1 : vector<8x128xf32>
    %46 = arith.mulf %43, %45 : vector<8x128xf32>
    %47 = arith.mulf %46, %33 : vector<8x128xf32>
    %48 = arith.subf %41, %47 : vector<8x128xf32>
    %49 = vector.shape_cast %48 : vector<8x128xf32> to vector<1x8x128xf32>
    %cst_19 = arith.constant dense<0.000000e+00> : vector<8x128xf32>
    %50 = vector.multi_reduction <add>, %49, %cst_19 [0] : vector<1x8x128xf32> to vector<8x128xf32>
    %51 = vector.shape_cast %50 : vector<8x128xf32> to vector<1x8x128xf32>
    %c0_20 = arith.constant 0 : index
    %c0_21 = arith.constant 0 : index
    %c0_22 = arith.constant 0 : index
    %52 = vector.load %arg3[%c0_20, %c0_21, %c0_22] : memref<1x8x128xf32, #tpu.memory_space<vmem>>, vector<1x8x128xf32>
    tpu.vector_store %arg3[%c0_20, %c0_21, %c0_22], %51 {strides = array<i32>} : memref<1x8x128xf32, #tpu.memory_space<vmem>>, vector<1x8x128xf32>,
    return
  }
  func.func @transform_0(%arg0: i32) -> (i32, i32) {
    %c0_i32 = arith.constant 0 : i32
    %c0_i32_0 = arith.constant 0 : i32
    return %arg0, %c0_i32 : i32, i32
  }
  func.func @transform_1(%arg0: i32) -> (i32, i32) {
    %c0_i32 = arith.constant 0 : i32
    %c0_i32_0 = arith.constant 0 : i32
    return %arg0, %c0_i32 : i32, i32
  }
  func.func @transform_2(%arg0: i32) -> (i32, i32, i32) {
    %c0_i32 = arith.constant 0 : i32
    %c0_i32_0 = arith.constant 0 : i32
    %c0_i32_1 = arith.constant 0 : i32
    return %arg0, %c0_i32, %c0_i32_0 : i32, i32, i32
  }
}

</mosaic_0001>

<llo_original>
// kernel: tpu_custom_call.1
$region0: #{tpu_custom_call.1}
  #allocation0 [shape = 'u32[]', space=smem, size = 0x4, offset = 0x4, fixed_abs, tag = 'smem constant byte address 0x4 - core index']
  #allocation1 [shape = 'u32[144,128]{1,0:T(1,128)}', space=vmem, size = 0x12000, scoped, tag = 'internal scratch']
  %s0 = inlined_call_operand.hbm [shape: f32[16,128], index: 0, kind: input, shape index: {}]
  %s1 = inlined_call_operand.hbm [shape: f32[16,128], index: 1, kind: input, shape index: {}]
  %s2 = inlined_call_operand.hbm [shape: f32[2,8,128], index: 2, kind: output, shape index: {}]
  %s3 = sld [smem:[#allocation0]]
  $region49: #{tpu_custom_call.1} parent=0
    _
  %s5 = ssub.s32 1, %s3
  %s6 = scalar_select 0, %s5, %s3
  $region1: #{tpu_custom_call.1} parent=0
    #allocation2 [shape = 'u8[8192]{0}', space=vmem, size = 0x2000, scoped, tag = 'input window, operand 0']
    #allocation3 [shape = 's32[2]{0}', space=sflag, size = 0x8, scoped, tag = 'scoped memory for tpu_custom_call.1']
    #allocation4 [shape = 's32[2]{0}', space=sflag, size = 0x8, scoped, tag = 'scoped memory for tpu_custom_call.1']
    #allocation5 [shape = 'u8[8192]{0}', space=vmem, size = 0x2000, scoped, tag = 'input window, operand 1']
    #allocation6 [shape = 's32[2]{0}', space=sflag, size = 0x8, scoped, tag = 'scoped memory for tpu_custom_call.1']
    #allocation7 [shape = 'u8[8192]{0}', space=vmem, size = 0x2000, scoped, tag = 'output window, operand 0']
    %7 = vsyncpa [#allocation3], 0
    %s8 = scalar_lea.sflag [#allocation3], 1
    %9 = vsyncpa %s8, 0
    %10 = vsyncpa [#allocation6], 0
    %s11 = scalar_lea.sflag [#allocation6], 1
    %12 = vsyncpa %s11, 0
    %13 = vsyncpa [#allocation4], 0
    %s14 = scalar_lea.sflag [#allocation4], 1
    %15 = vsyncpa %s14, 0
    loop: start=0, step=1, limit=4
    $region2: #{tpu_custom_call.1} parent=1 // loop_pre_header
      _
    $region3: #{tpu_custom_call.1} parent=1 // loop_header
      %s17 = sphi 0, %s21
      %p18 = scmp.ge.s32.totalorder %s17, 4
      %s27 = sphi 0, %s29
      %s30 = sphi 0, %s27
      %s31 = sphi 0, %s30
      %s47 = sphi 0, %s31
      %s53 = sphi 0, %s55
      %s56 = sphi 0, %s53
      %s57 = sphi 0, %s56
      %s73 = sphi 0, %s57
      %s79 = sphi 0, %s81
      %s82 = sphi 0, %s79
      %s83 = sphi 0, %s82
      %s99 = sphi 0, %s83
    $region4: #{tpu_custom_call.1} parent=1 // loop_header_branch
      %20 = sbr.rel (%p18) target = $region8
    $region5: #{tpu_custom_call.1} parent=1 // loop_body
      %s22 = ssub.s32 %s17, 1
      %s23 = ssub.s32 %s17, 2
      %s24 = sadd.s32 %s17, 1
      %s25 = ssub.s32 %s17, %s24
      %p26 = scmp.eq.s32.totalorder %s25, 0
      %s28 = sadd.s32 %s27, 1
      %s29 = scalar_select %p26, %s27, %s28
      %p32 = pneg %p26
      %p33 = scmp.eq.s32.totalorder %s17, 1
      %p34 = por %p32, %p33
      %p35 = scmp.ne.s32.totalorder %s27, %s30
      %p36 = scmp.eq.s32.totalorder %s17, 0
      %p37 = por %p35, %p36
      %p38 = scmp.ne.s32.totalorder %s27, %s30
      %p39 = scmp.eq.s32.totalorder %s22, 1
      %p40 = por %p38, %p39
      %p41 = scmp.ne.s32.totalorder %s30, %s31
      %p42 = scmp.eq.s32.totalorder %s22, 0
      %p43 = por %p41, %p42
      %p44 = scmp.ne.s32.totalorder %s30, %s31
      %p45 = scmp.eq.s32.totalorder %s23, 1
      %p46 = por %p44, %p45
      %p48 = scmp.ne.s32.totalorder %s31, %s47
      %p49 = scmp.eq.s32.totalorder %s23, 0
      %p50 = por %p48, %p49
      %s51 = ssub.s32 %s17, %s24
      %p52 = scmp.eq.s32.totalorder %s51, 0
      %s54 = sadd.s32 %s53, 1
      %s55 = scalar_select %p52, %s53, %s54
      %p58 = pneg %p52
      %p59 = scmp.eq.s32.totalorder %s17, 1
      %p60 = por %p58, %p59
      %p61 = scmp.ne.s32.totalorder %s53, %s56
      %p62 = scmp.eq.s32.totalorder %s17, 0
      %p63 = por %p61, %p62
      %p64 = scmp.ne.s32.totalorder %s53, %s56
      %p65 = scmp.eq.s32.totalorder %s22, 1
      %p66 = por %p64, %p65
      %p67 = scmp.ne.s32.totalorder %s56, %s57
      %p68 = scmp.eq.s32.totalorder %s22, 0
      %p69 = por %p67, %p68
      %p70 = scmp.ne.s32.totalorder %s56, %s57
      %p71 = scmp.eq.s32.totalorder %s23, 1
      %p72 = por %p70, %p71
      %p74 = scmp.ne.s32.totalorder %s57, %s73
      %p75 = scmp.eq.s32.totalorder %s23, 0
      %p76 = por %p74, %p75
      %s77 = ssub.s32 %s17, %s24
      %p78 = scmp.eq.s32.totalorder %s77, 0
      %s80 = sadd.s32 %s79, 1
      %s81 = scalar_select %p78, %s79, %s80
      %p84 = pneg %p78
      %p85 = scmp.eq.s32.totalorder %s17, 1
      %p86 = por %p84, %p85
      %p87 = scmp.ne.s32.totalorder %s79, %s82
      %p88 = scmp.eq.s32.totalorder %s17, 0
      %p89 = por %p87, %p88
      %p90 = scmp.ne.s32.totalorder %s79, %s82
      %p91 = scmp.eq.s32.totalorder %s22, 1
      %p92 = por %p90, %p91
      %p93 = scmp.ne.s32.totalorder %s82, %s83
      %p94 = scmp.eq.s32.totalorder %s22, 0
      %p95 = por %p93, %p94
      %p96 = scmp.ne.s32.totalorder %s82, %s83
      %p97 = scmp.eq.s32.totalorder %s23, 1
      %p98 = por %p96, %p97
      %p100 = scmp.ne.s32.totalorder %s83, %s99
      %p101 = scmp.eq.s32.totalorder %s23, 0
      %p102 = por %p100, %p101
      %p103 = scmp.le.s32.totalorder 1, %s17
      %p104 = scmp.lt.s32.totalorder %s17, 3
      %p105 = pnand %p103, %p104
      %p106 = pneg %p105
      // Predicated region
      $region9: #{tpu_custom_call.1} parent=5 // pred_check
        _
      $region10: #{tpu_custom_call.1} parent=5 // pred_check_branch
        %108 = sbr.rel (%p105) target = $region12
      $region11: #{tpu_custom_call.1} parent=5 // pred_region
        %s109 = ssub.s32 %s17, 1
      $region12: #{tpu_custom_call.1} parent=5 // pred_fallthru
        _
      %p110 = scmp.lt.s32.totalorder %s17, 2
      // Predicated region
      $region13: #{tpu_custom_call.1} parent=5 // pred_check
        %p111 = pneg %p110
      $region14: #{tpu_custom_call.1} parent=5 // pred_check_branch
        %113 = sbr.rel (%p111) target = $region16
      $region15: #{tpu_custom_call.1} parent=5 // pred_region
        // Predicated region
        $region17: #{tpu_custom_call.1} parent=15 // pred_check
          %p114 = pneg %p37
        $region18: #{tpu_custom_call.1} parent=15 // pred_check_branch
          %116 = sbr.rel (%p114) target = $region20
        $region19: #{tpu_custom_call.1} parent=15 // pred_region
          %s117 = sand.u32 %s27, 1
          %s118 = scalar_lea.sflag [#allocation3], %s117
          %s119 = sand.u32 %s27, 1
          %s120 = smul.addr %s119, 8
          %s121 = scalar_lea.vmem [#allocation2], %s120
          %s123 = ssub.s32 128, 128
          %124 = vsyncadd %s118, %s123
          %s125 = smul.addr %s17, 128
          %s126 = scalar_lea.hbm %s0, %s125
          %s128 = sshll.u32 %s121, 4
          %s129 = int_to_ptr.vmem [resolvable:$true] %s128
          %131 = dma.hbm_to_vmem [thread:$0]  %s126, 128, %s129, %s118
        $region20: #{tpu_custom_call.1} parent=15 // pred_fallthru
          _
        // Predicated region
        $region21: #{tpu_custom_call.1} parent=15 // pred_check
          %p132 = pneg %p63
        $region22: #{tpu_custom_call.1} parent=15 // pred_check_branch
          %134 = sbr.rel (%p132) target = $region24
        $region23: #{tpu_custom_call.1} parent=15 // pred_region
          %s135 = sand.u32 %s53, 1
          %s136 = scalar_lea.sflag [#allocation6], %s135
          %s137 = sand.u32 %s53, 1
          %s138 = smul.addr %s137, 8
          %s139 = scalar_lea.vmem [#allocation5], %s138
          %s141 = ssub.s32 128, 128
          %142 = vsyncadd %s136, %s141
          %s143 = smul.addr %s17, 128
          %s144 = scalar_lea.hbm %s1, %s143
          %s146 = sshll.u32 %s139, 4
          %s147 = int_to_ptr.vmem [resolvable:$true] %s146
          %149 = dma.hbm_to_vmem [thread:$0]  %s144, 128, %s147, %s136
        $region24: #{tpu_custom_call.1} parent=15 // pred_fallthru
          _
      $region16: #{tpu_custom_call.1} parent=5 // pred_fallthru
        _
      %p150 = scmp.le.s32.totalorder 1, %s17
      %p151 = scmp.lt.s32.totalorder %s17, 3
      %p152 = pnand %p150, %p151
      %p153 = pneg %p152
      // Predicated region
      $region25: #{tpu_custom_call.1} parent=5 // pred_check
        _
      $region26: #{tpu_custom_call.1} parent=5 // pred_check_branch
        %155 = sbr.rel (%p152) target = $region28
      $region27: #{tpu_custom_call.1} parent=5 // pred_region
        %s156 = ssub.s32 %s17, 1
        %s157 = sand.u32 %s30, 1
        %s158 = scalar_lea.sflag [#allocation3], %s157
        %s159 = sand.u32 %s30, 1
        %s160 = smul.addr %s159, 8
        %s161 = scalar_lea.vmem [#allocation2], %s160
        // Predicated region
        $region29: #{tpu_custom_call.1} parent=27 // pred_check
          %p162 = pneg %p43
        $region30: #{tpu_custom_call.1} parent=27 // pred_check_branch
          %164 = sbr.rel (%p162) target = $region32
        $region31: #{tpu_custom_call.1} parent=27 // pred_region
          %165 = dma.done %s158, 128
        $region32: #{tpu_custom_call.1} parent=27 // pred_fallthru
          _
        %s166 = sand.u32 %s56, 1
        %s167 = scalar_lea.sflag [#allocation6], %s166
        %s168 = sand.u32 %s56, 1
        %s169 = smul.addr %s168, 8
        %s170 = scalar_lea.vmem [#allocation5], %s169
        // Predicated region
        $region33: #{tpu_custom_call.1} parent=27 // pred_check
          %p171 = pneg %p69
        $region34: #{tpu_custom_call.1} parent=27 // pred_check_branch
          %173 = sbr.rel (%p171) target = $region36
        $region35: #{tpu_custom_call.1} parent=27 // pred_region
          %174 = dma.done %s167, 128
        $region36: #{tpu_custom_call.1} parent=27 // pred_fallthru
          _
        %s175 = sand.u32 %s30, 1
        %s176 = scalar_lea.sflag [#allocation3], %s175
        %s177 = sand.u32 %s30, 1
        %s178 = smul.addr %s177, 8
        %s179 = scalar_lea.vmem [#allocation2], %s178
        %p180 = pneg %p43
        %p181 = pneg %p40
        %s182 = sand.u32 %s56, 1
        %s183 = scalar_lea.sflag [#allocation6], %s182
        %s184 = sand.u32 %s56, 1
        %s185 = smul.addr %s184, 8
        %s186 = scalar_lea.vmem [#allocation5], %s185
        %p187 = pneg %p69
        %p188 = pneg %p66
        %p189 = pneg %p95
        %p190 = pneg %p92
        %s191 = sand.u32 %s82, 1
        %s192 = scalar_lea.sflag [#allocation4], %s191
        %s193 = sand.u32 %s82, 1
        %s194 = smul.addr %s193, 8
        %s195 = scalar_lea.vmem [#allocation7], %s194
        %v196 = vld [vmem:[%s161] sm:$0xff]
        %v197 = vld [vmem:[%s170] sm:$0xff]
        %v198 = vmax.f32 %v196, -30.0
        %v199 = vmin.f32 %v198, 30.0
        %v200 = vsub.f32 0.0, %v199
        %v201 = vmul.f32 %v200, 1.442695
        %v202 = vpow.pop %v201
        %v203 = vadd.f32 %v202, 1.0
        %v204 = vrcp.pop %v203
        %v205 = vmul.f32 %v203, %v204
        %v206 = vsub.f32 2.0, %v205
        %v207 = vmul.f32 %v204, %v206
        %v208 = vmax.f32 %v207, 1e-05
        %v209 = vmin.f32 %v208, 0.99999
        %v210 = vlog2.pop %v203
        %v211 = vmul.f32 %v210, 0.6931472
        %v212 = vsub.f32 0.0, %v211
        %v213 = vmax.f32 %v212, -11.512925
        %v214 = vmin.f32 %v213, -1.001363e-05
        %v215 = vsub.f32 %v200, %v211
        %v216 = vmax.f32 %v215, -11.511568
        %v217 = vmin.f32 %v216, -1.001363e-05
        %v218 = vsub.f32 1.0, %v209
        %v219 = vmul.f32 %v218, %v218
        %v220 = vmul.f32 %v209, %v209
        %v221 = vmul.f32 %v219, -0.5
        %v222 = vmul.f32 %v221, %v197
        %v223 = vmul.f32 %v222, %v214
        %v224 = vmul.f32 %v220, 0.5
        %v225 = vsub.f32 1.0, %v197
        %v226 = vmul.f32 %v224, %v225
        %v227 = vmul.f32 %v226, %v217
        %v228 = vsub.f32 %v223, %v227
        %v229 = vadd.f32 %v228, 0.0
        %230 = vst [vmem:[%s195] sm:$0xff] %v229
        %s231 = sand.u32 %s82, 1
        %s232 = scalar_lea.sflag [#allocation4], %s231
        %s233 = sand.u32 %s82, 1
        %s234 = smul.addr %s233, 8
        %s235 = scalar_lea.vmem [#allocation7], %s234
        // Predicated region
        $region37: #{tpu_custom_call.1} parent=27 // pred_check
          %p236 = pneg %p92
        $region38: #{tpu_custom_call.1} parent=27 // pred_check_branch
          %238 = sbr.rel (%p236) target = $region40
        $region39: #{tpu_custom_call.1} parent=27 // pred_region
          %s240 = ssub.s32 128, 128
          %241 = vsyncadd %s232, %s240
          %s242 = smul.addr %s22, 128
          %s243 = scalar_lea.hbm %s2, %s242
          %s245 = sshll.u32 %s235, 4
          %s246 = int_to_ptr.vmem [resolvable:$true] %s245
          %248 = dma.vmem_to_hbm [thread:$0]  %s246, 128, %s243, %s232
        $region40: #{tpu_custom_call.1} parent=27 // pred_fallthru
          _
      $region28: #{tpu_custom_call.1} parent=5 // pred_fallthru
        _
      %p249 = scmp.le.s32.totalorder 2, %s17
      // Predicated region
      $region41: #{tpu_custom_call.1} parent=5 // pred_check
        %p250 = pneg %p249
      $region42: #{tpu_custom_call.1} parent=5 // pred_check_branch
        %252 = sbr.rel (%p250) target = $region44
      $region43: #{tpu_custom_call.1} parent=5 // pred_region
        %s253 = ssub.s32 %s17, 2
        // Predicated region
        $region45: #{tpu_custom_call.1} parent=43 // pred_check
          %p254 = pneg %p98
        $region46: #{tpu_custom_call.1} parent=43 // pred_check_branch
          %256 = sbr.rel (%p254) target = $region48
        $region47: #{tpu_custom_call.1} parent=43 // pred_region
          %s257 = sand.u32 %s83, 1
          %s258 = scalar_lea.sflag [#allocation4], %s257
          %s259 = sand.u32 %s83, 1
          %s260 = smul.addr %s259, 8
          %s261 = scalar_lea.vmem [#allocation7], %s260
          %262 = dma.done %s258, 128
        $region48: #{tpu_custom_call.1} parent=43 // pred_fallthru
          _
      $region44: #{tpu_custom_call.1} parent=5 // pred_fallthru
        _
    $region6: #{tpu_custom_call.1} parent=1 // loop_footer
      %s21 = sadd.s32 1, %s17
    $region7: #{tpu_custom_call.1} parent=1 // loop_footer_branch
      %16 = sbr.rel target = $region3
    $region8: #{tpu_custom_call.1} parent=1 // loop_exit
      _
    %263 = vsyncpa [#allocation3], 1
    %s264 = scalar_lea.sflag [#allocation3], 1
    %265 = vsyncpa %s264, 1
    %266 = vsyncpa [#allocation6], 1
    %s267 = scalar_lea.sflag [#allocation6], 1
    %268 = vsyncpa %s267, 1
    %269 = vsyncpa [#allocation4], 1
    %s270 = scalar_lea.sflag [#allocation4], 1
    %271 = vsyncpa %s270, 1

</llo_original>
